<compile_context>
chip_gen: v5e
topology: v5e:2x2
jax: 0.10.0
libtpu: 0.0.40
codegen_flags: <defaults>
</compile_context>

<pallas_src>
import functools

import jax
import jax.numpy as jnp
from jax.experimental import pallas as pl
from jax.experimental.pallas import tpu as pltpu


def _round_up(n: int, m: int) -> int:
    return ((n + m - 1) // m) * m


def _snn_kernel(params_ref, x_ref, spk1_ref, spk2_ref, mem2_ref, *,
                num_steps: int, dynamic_input: bool):
    """One batch tile of the two-layer LIF network.

    params_ref : SMEM f32[16] = [W1(4, row-major out x in), b1(2),
                                 W2(4), b2(2), beta1, thr1, beta2, thr2]
    x_ref      : VMEM f32[T_x, 2, TB]   (T_x = num_steps if dynamic else 1)
    out refs   : VMEM f32[num_steps, 2, TB]
    """
    f32 = jnp.float32
    p = lambda i: params_ref[i]
    W1 = ((p(0), p(1)), (p(2), p(3)))
    B1 = (p(4), p(5))
    W2 = ((p(6), p(7)), (p(8), p(9)))
    B2 = (p(10), p(11))
    beta1, thr1, beta2, thr2 = p(12), p(13), p(14), p(15)

    def linear(W, bias, a0, a1):
        # K=2 contraction unrolled as scalar * vector FMAs on the VPU; an MXU
        # pass would waste >98% of the systolic array on a 2-wide dot.
        return [W[j][0] * a0 + W[j][1] * a1 + bias[j] for j in range(2)]

    def lif(cur, mem, beta, thr):
        # snnTorch Leaky, reset_mechanism="subtract":
        #   reset = H(mem_prev - thr)
        #   mem   = beta * mem_prev + cur - reset * thr
        #   spk   = H(mem - thr)
        rst = [(mem[j] > thr).astype(f32) for j in range(2)]
        new_mem = [beta * mem[j] + cur[j] - rst[j] * thr for j in range(2)]
        spk = [(new_mem[j] > thr).astype(f32) for j in range(2)]
        return spk, new_mem

    def input_rows(t):
        xt = x_ref[t]                       # (2, TB): features on sublanes
        return xt[0:1, :], xt[1:2, :]       # two (1, TB) lane-dense rows

    tb = x_ref.shape[-1]
    zeros = jnp.zeros((1, tb), f32)
    mem1 = [zeros, zeros]                   # lif1.init_leaky()
    mem2 = [zeros, zeros]                   # lif2.init_leaky()

    if not dynamic_input:
        x0, x1 = input_rows(0)
        cur1_static = linear(W1, B1, x0, x1)

    for step in range(num_steps):           # small static trip count -> unrolled
        if dynamic_input:
            x0, x1 = input_rows(step)
            cur1 = linear(W1, B1, x0, x1)
        else:
            cur1 = cur1_static

        spk1, mem1 = lif(cur1, mem1, beta1, thr1)
        cur2 = linear(W2, B2, spk1[0], spk1[1])
        spk2, mem2 = lif(cur2, mem2, beta2, thr2)

        spk1_ref[step] = jnp.concatenate(spk1, axis=0)
        spk2_ref[step] = jnp.concatenate(spk2, axis=0)
        mem2_ref[step] = jnp.concatenate(mem2, axis=0)


def snn_forward(x, w1, b1, w2, b2, beta1, thr1, beta2, thr2, *,
                num_steps: int = 2, dynamic_input: bool = False,
                block_b: int = 2048):
    """JAX/Pallas equivalent of SNN.forward.

    x  : (B, 2) if not dynamic_input, else (B, num_steps, 2)
    w1, w2 : (2, 2) in PyTorch nn.Linear layout (out_features, in_features)
    b1, b2 : (2,)
    Returns (spk1, spk2, mem2), each (num_steps, B, 2), matching
    torch.stack(..., dim=0) of the module.
    """
    x = jnp.asarray(x, jnp.float32)
    B = x.shape[0]
    D = 2

    # (features, batch) layout: batch on the 128-wide lane axis.
    if dynamic_input:
        x_t = jnp.transpose(x, (1, 2, 0))        # (num_steps, 2, B)
    else:
        x_t = jnp.transpose(x, (1, 0))[None]     # (1, 2, B)
    t_x = x_t.shape[0]

    tb = min(block_b, _round_up(B, 128))         # lane tile, multiple of 128
    b_pad = _round_up(B, tb)
    if b_pad != B:
        x_t = jnp.pad(x_t, ((0, 0), (0, 0), (0, b_pad - B)))

    # All parameters packed into one flat SMEM scalar-prefetch vector: scalar
    # loads feed the (otherwise idle) scalar slot instead of four padded
    # (8,128) VMEM tiles for ~48 bytes of parameters.
    params = jnp.concatenate([
        jnp.ravel(jnp.asarray(w1, jnp.float32)),   # W1 row-major (out, in)
        jnp.ravel(jnp.asarray(b1, jnp.float32)),
        jnp.ravel(jnp.asarray(w2, jnp.float32)),
        jnp.ravel(jnp.asarray(b2, jnp.float32)),
        jnp.stack([
            jnp.clip(jnp.asarray(beta1, jnp.float32), 0.0, 1.0),  # beta.clamp(0,1)
            jnp.asarray(thr1, jnp.float32),
            jnp.clip(jnp.asarray(beta2, jnp.float32), 0.0, 1.0),
            jnp.asarray(thr2, jnp.float32),
        ]),
    ])

    out_struct = jax.ShapeDtypeStruct((num_steps, D, b_pad), jnp.float32)
    out_spec = pl.BlockSpec((num_steps, D, tb), lambda i, *_: (0, 0, i))

    kernel = functools.partial(_snn_kernel, num_steps=num_steps,
                               dynamic_input=dynamic_input)

    spk1_t, spk2_t, mem2_t = pl.pallas_call(
        kernel,
        out_shape=(out_struct, out_struct, out_struct),
        grid_spec=pltpu.PrefetchScalarGridSpec(
            num_scalar_prefetch=1,
            grid=(b_pad // tb,),
            in_specs=[pl.BlockSpec((t_x, D, tb), lambda i, *_: (0, 0, i))],
            out_specs=(out_spec, out_spec, out_spec),
        ),
        compiler_params=pltpu.CompilerParams(
            dimension_semantics=("parallel",)),
    )(params, x_t)

    # (num_steps, 2, B_pad) -> (num_steps, B, 2)
    unpack = lambda a: jnp.transpose(a[:, :, :B], (0, 2, 1))
    return unpack(spk1_t), unpack(spk2_t), unpack(mem2_t)


def ref_forward(x, w1, b1, w2, b2, beta1, thr1, beta2, thr2, *,
                num_steps=2, dynamic_input=False):
    """Pure-JAX reference matching snnTorch Leaky (subtract reset, H(mem-thr))."""
    x = jnp.asarray(x, jnp.float32)
    B = x.shape[0]
    beta1 = jnp.clip(jnp.asarray(beta1, jnp.float32), 0.0, 1.0)
    beta2 = jnp.clip(jnp.asarray(beta2, jnp.float32), 0.0, 1.0)
    mem1 = jnp.zeros((B, 2), jnp.float32)
    mem2 = jnp.zeros((B, 2), jnp.float32)
    spk1_rec, spk2_rec, mem2_rec = [], [], []
    for step in range(num_steps):
        xin = x[:, step, :] if dynamic_input else x
        cur1 = xin @ w1.T + b1
        rst1 = (mem1 > thr1).astype(jnp.float32)
        mem1 = beta1 * mem1 + cur1 - rst1 * thr1
        spk1 = (mem1 > thr1).astype(jnp.float32)
        cur2 = spk1 @ w2.T + b2
        rst2 = (mem2 > thr2).astype(jnp.float32)
        mem2 = beta2 * mem2 + cur2 - rst2 * thr2
        spk2 = (mem2 > thr2).astype(jnp.float32)
        spk1_rec.append(spk1)
        spk2_rec.append(spk2)
        mem2_rec.append(mem2)
    return jnp.stack(spk1_rec), jnp.stack(spk2_rec), jnp.stack(mem2_rec)


if __name__ == "__main__":
    key = jax.random.PRNGKey(0)
    kx, kxd, k1, k2, k3, k4 = jax.random.split(key, 6)

    B, D_IN, NUM_STEPS = 8, 2, 2

    # Parameters mimic the module: fc1.weight ~ U(0, 2), fc2.weight ~ U(-1, 3),
    # biases keep nn.Linear's default U(-1/sqrt(in), 1/sqrt(in)),
    # snn.Leaky(beta=0.5, threshold=1.0) for both layers.
    bound = 1.0 / (D_IN ** 0.5)
    w1 = jax.random.uniform(k1, (2, 2), jnp.float32, 0.0, 2.0)     # (out, in)
    b1 = jax.random.uniform(k2, (2,), jnp.float32, -bound, bound)
    w2 = jax.random.uniform(k3, (2, 2), jnp.float32, -1.0, 3.0)
    b2 = jax.random.uniform(k4, (2,), jnp.float32, -bound, bound)
    beta1 = jnp.float32(0.5)
    thr1 = jnp.float32(1.0)
    beta2 = jnp.float32(0.5)
    thr2 = jnp.float32(1.0)
    prm = (w1, b1, w2, b2, beta1, thr1, beta2, thr2)

    def check(xin, *, num_steps, dynamic_input, block_b=2048):
        got = snn_forward(xin, *prm, num_steps=num_steps,
                          dynamic_input=dynamic_input, block_b=block_b)
        jax.block_until_ready(got)
        want = ref_forward(xin, *prm, num_steps=num_steps,
                           dynamic_input=dynamic_input)
        for g, w in zip(got, want):
            assert g.shape == w.shape, (g.shape, w.shape)
            assert jnp.allclose(g, w, atol=1e-5, rtol=1e-5)

    # 1) Default module config: static input, num_steps=2, small batch.
    x = jax.random.normal(kx, (B, D_IN), dtype=jnp.float32)
    check(x, num_steps=NUM_STEPS, dynamic_input=False)

    # 2) Multi-block parallel grid + batch-padding path.
    xb = jax.random.normal(kx, (300, D_IN), dtype=jnp.float32)
    check(xb, num_steps=NUM_STEPS, dynamic_input=False, block_b=128)

    # 3) dynamic_input=True: x is (B, num_steps, 2).
    xd = jax.random.normal(kxd, (B, NUM_STEPS, D_IN), dtype=jnp.float32)
    check(xd, num_steps=NUM_STEPS, dynamic_input=True)

    print("KERNEL_OK")
</pallas_src>

<mosaic_0001>
module attributes {stable_mosaic.version = 11 : i64} {
  func.func @_snn_kernel(%arg0: i32, %arg1: memref<16xf32, #tpu.memory_space<smem>>, %arg2: memref<1x2x128xf32, #tpu.memory_space<vmem>>, %arg3: memref<2x2x128xf32, #tpu.memory_space<vmem>>, %arg4: memref<2x2x128xf32, #tpu.memory_space<vmem>>, %arg5: memref<2x2x128xf32, #tpu.memory_space<vmem>>) attributes {dimension_semantics = [#tpu.dimension_semantics<parallel>], iteration_bounds = array<i64: 1>, scalar_prefetch = 1 : i64, scratch_operands = 0 : i64, tpu.core_type = #tpu.core_type<tc>, window_params = [{transform_indices = @transform_0, window_bounds = array<i64: 1, 2, 128>}, {transform_indices = @transform_1, window_bounds = array<i64: 2, 2, 128>}, {transform_indices = @transform_2, window_bounds = array<i64: 2, 2, 128>}, {transform_indices = @transform_3, window_bounds = array<i64: 2, 2, 128>}]} {
    %c0 = arith.constant 0 : index
    %0 = memref.load %arg1[%c0] : memref<16xf32, #tpu.memory_space<smem>>
    %c1 = arith.constant 1 : index
    %1 = memref.load %arg1[%c1] : memref<16xf32, #tpu.memory_space<smem>>
    %c2 = arith.constant 2 : index
    %2 = memref.load %arg1[%c2] : memref<16xf32, #tpu.memory_space<smem>>
    %c3 = arith.constant 3 : index
    %3 = memref.load %arg1[%c3] : memref<16xf32, #tpu.memory_space<smem>>
    %c4 = arith.constant 4 : index
    %4 = memref.load %arg1[%c4] : memref<16xf32, #tpu.memory_space<smem>>
    %c5 = arith.constant 5 : index
    %5 = memref.load %arg1[%c5] : memref<16xf32, #tpu.memory_space<smem>>
    %c6 = arith.constant 6 : index
    %6 = memref.load %arg1[%c6] : memref<16xf32, #tpu.memory_space<smem>>
    %c7 = arith.constant 7 : index
    %7 = memref.load %arg1[%c7] : memref<16xf32, #tpu.memory_space<smem>>
    %c8 = arith.constant 8 : index
    %8 = memref.load %arg1[%c8] : memref<16xf32, #tpu.memory_space<smem>>
    %c9 = arith.constant 9 : index
    %9 = memref.load %arg1[%c9] : memref<16xf32, #tpu.memory_space<smem>>
    %c10 = arith.constant 10 : index
    %10 = memref.load %arg1[%c10] : memref<16xf32, #tpu.memory_space<smem>>
    %c11 = arith.constant 11 : index
    %11 = memref.load %arg1[%c11] : memref<16xf32, #tpu.memory_space<smem>>
    %c12 = arith.constant 12 : index
    %12 = memref.load %arg1[%c12] : memref<16xf32, #tpu.memory_space<smem>>
    %c13 = arith.constant 13 : index
    %13 = memref.load %arg1[%c13] : memref<16xf32, #tpu.memory_space<smem>>
    %c14 = arith.constant 14 : index
    %14 = memref.load %arg1[%c14] : memref<16xf32, #tpu.memory_space<smem>>
    %c15 = arith.constant 15 : index
    %15 = memref.load %arg1[%c15] : memref<16xf32, #tpu.memory_space<smem>>
    %cst = arith.constant 0.000000e+00 : f32
    %16 = vector.broadcast %cst : f32 to vector<1x128xf32>
    %c0_0 = arith.constant 0 : index
    %c0_1 = arith.constant 0 : index
    %c0_2 = arith.constant 0 : index
    %17 = vector.load %arg2[%c0_0, %c0_1, %c0_2] : memref<1x2x128xf32, #tpu.memory_space<vmem>>, vector<1x2x128xf32>
    %18 = vector.shape_cast %17 : vector<1x2x128xf32> to vector<2x128xf32>
    %19 = vector.extract_strided_slice %18 {offsets = [0, 0], sizes = [1, 128], strides = [1, 1]} : vector<2x128xf32> to vector<1x128xf32>
    %20 = vector.extract_strided_slice %18 {offsets = [1, 0], sizes = [1, 128], strides = [1, 1]} : vector<2x128xf32> to vector<1x128xf32>
    %21 = vector.broadcast %0 : f32 to vector<1x128xf32>
    %22 = arith.mulf %21, %19 : vector<1x128xf32>
    %23 = vector.broadcast %1 : f32 to vector<1x128xf32>
    %24 = arith.mulf %23, %20 : vector<1x128xf32>
    %25 = arith.addf %22, %24 : vector<1x128xf32>
    %26 = vector.broadcast %4 : f32 to vector<1x128xf32>
    %27 = arith.addf %25, %26 : vector<1x128xf32>
    %28 = vector.broadcast %2 : f32 to vector<1x128xf32>
    %29 = arith.mulf %28, %19 : vector<1x128xf32>
    %30 = vector.broadcast %3 : f32 to vector<1x128xf32>
    %31 = arith.mulf %30, %20 : vector<1x128xf32>
    %32 = arith.addf %29, %31 : vector<1x128xf32>
    %33 = vector.broadcast %5 : f32 to vector<1x128xf32>
    %34 = arith.addf %32, %33 : vector<1x128xf32>
    %35 = vector.broadcast %13 : f32 to vector<1x128xf32>
    %36 = arith.cmpf ogt, %16, %35 : vector<1x128xf32>
    %37 = arith.extui %36 : vector<1x128xi1> to vector<1x128xi32>
    %38 = arith.sitofp %37 : vector<1x128xi32> to vector<1x128xf32>
    %39 = vector.broadcast %13 : f32 to vector<1x128xf32>
    %40 = arith.cmpf ogt, %16, %39 : vector<1x128xf32>
    %41 = arith.extui %40 : vector<1x128xi1> to vector<1x128xi32>
    %42 = arith.sitofp %41 : vector<1x128xi32> to vector<1x128xf32>
    %43 = vector.broadcast %12 : f32 to vector<1x128xf32>
    %44 = arith.mulf %43, %16 : vector<1x128xf32>
    %45 = arith.addf %44, %27 : vector<1x128xf32>
    %46 = vector.broadcast %13 : f32 to vector<1x128xf32>
    %47 = arith.mulf %38, %46 : vector<1x128xf32>
    %48 = arith.subf %45, %47 : vector<1x128xf32>
    %49 = vector.broadcast %12 : f32 to vector<1x128xf32>
    %50 = arith.mulf %49, %16 : vector<1x128xf32>
    %51 = arith.addf %50, %34 : vector<1x128xf32>
    %52 = vector.broadcast %13 : f32 to vector<1x128xf32>
    %53 = arith.mulf %42, %52 : vector<1x128xf32>
    %54 = arith.subf %51, %53 : vector<1x128xf32>
    %55 = vector.broadcast %13 : f32 to vector<1x128xf32>
    %56 = arith.cmpf ogt, %48, %55 : vector<1x128xf32>
    %57 = arith.extui %56 : vector<1x128xi1> to vector<1x128xi32>
    %58 = arith.sitofp %57 : vector<1x128xi32> to vector<1x128xf32>
    %59 = vector.broadcast %13 : f32 to vector<1x128xf32>
    %60 = arith.cmpf ogt, %54, %59 : vector<1x128xf32>
    %61 = arith.extui %60 : vector<1x128xi1> to vector<1x128xi32>
    %62 = arith.sitofp %61 : vector<1x128xi32> to vector<1x128xf32>
    %63 = vector.broadcast %6 : f32 to vector<1x128xf32>
    %64 = arith.mulf %63, %58 : vector<1x128xf32>
    %65 = vector.broadcast %7 : f32 to vector<1x128xf32>
    %66 = arith.mulf %65, %62 : vector<1x128xf32>
    %67 = arith.addf %64, %66 : vector<1x128xf32>
    %68 = vector.broadcast %10 : f32 to vector<1x128xf32>
    %69 = arith.addf %67, %68 : vector<1x128xf32>
    %70 = vector.broadcast %8 : f32 to vector<1x128xf32>
    %71 = arith.mulf %70, %58 : vector<1x128xf32>
    %72 = vector.broadcast %9 : f32 to vector<1x128xf32>
    %73 = arith.mulf %72, %62 : vector<1x128xf32>
    %74 = arith.addf %71, %73 : vector<1x128xf32>
    %75 = vector.broadcast %11 : f32 to vector<1x128xf32>
    %76 = arith.addf %74, %75 : vector<1x128xf32>
    %77 = vector.broadcast %15 : f32 to vector<1x128xf32>
    %78 = arith.cmpf ogt, %16, %77 : vector<1x128xf32>
    %79 = arith.extui %78 : vector<1x128xi1> to vector<1x128xi32>
    %80 = arith.sitofp %79 : vector<1x128xi32> to vector<1x128xf32>
    %81 = vector.broadcast %15 : f32 to vector<1x128xf32>
    %82 = arith.cmpf ogt, %16, %81 : vector<1x128xf32>
    %83 = arith.extui %82 : vector<1x128xi1> to vector<1x128xi32>
    %84 = arith.sitofp %83 : vector<1x128xi32> to vector<1x128xf32>
    %85 = vector.broadcast %14 : f32 to vector<1x128xf32>
    %86 = arith.mulf %85, %16 : vector<1x128xf32>
    %87 = arith.addf %86, %69 : vector<1x128xf32>
    %88 = vector.broadcast %15 : f32 to vector<1x128xf32>
    %89 = arith.mulf %80, %88 : vector<1x128xf32>
    %90 = arith.subf %87, %89 : vector<1x128xf32>
    %91 = vector.broadcast %14 : f32 to vector<1x128xf32>
    %92 = arith.mulf %91, %16 : vector<1x128xf32>
    %93 = arith.addf %92, %76 : vector<1x128xf32>
    %94 = vector.broadcast %15 : f32 to vector<1x128xf32>
    %95 = arith.mulf %84, %94 : vector<1x128xf32>
    %96 = arith.subf %93, %95 : vector<1x128xf32>
    %97 = vector.broadcast %15 : f32 to vector<1x128xf32>
    %98 = arith.cmpf ogt, %90, %97 : vector<1x128xf32>
    %99 = arith.extui %98 : vector<1x128xi1> to vector<1x128xi32>
    %100 = arith.sitofp %99 : vector<1x128xi32> to vector<1x128xf32>
    %101 = vector.broadcast %15 : f32 to vector<1x128xf32>
    %102 = arith.cmpf ogt, %96, %101 : vector<1x128xf32>
    %103 = arith.extui %102 : vector<1x128xi1> to vector<1x128xi32>
    %104 = arith.sitofp %103 : vector<1x128xi32> to vector<1x128xf32>
    %105 = tpu.concatenate %58, %62 in 0 : vector<1x128xf32>, vector<1x128xf32> -> vector<2x128xf32>
    %c0_3 = arith.constant 0 : index
    %c0_4 = arith.constant 0 : index
    %c0_5 = arith.constant 0 : index
    %106 = vector.load %arg3[%c0_3, %c0_4, %c0_5] : memref<2x2x128xf32, #tpu.memory_space<vmem>>, vector<1x2x128xf32>
    %107 = vector.shape_cast %106 : vector<1x2x128xf32> to vector<2x128xf32>
    %108 = vector.shape_cast %105 : vector<2x128xf32> to vector<1x2x128xf32>
    tpu.vector_store %arg3[%c0_3, %c0_4, %c0_5], %108 {strides = array<i32>} : memref<2x2x128xf32, #tpu.memory_space<vmem>>, vector<1x2x128xf32>,
    %109 = tpu.concatenate %100, %104 in 0 : vector<1x128xf32>, vector<1x128xf32> -> vector<2x128xf32>
    %c0_6 = arith.constant 0 : index
    %c0_7 = arith.constant 0 : index
    %c0_8 = arith.constant 0 : index
    %110 = vector.load %arg4[%c0_6, %c0_7, %c0_8] : memref<2x2x128xf32, #tpu.memory_space<vmem>>, vector<1x2x128xf32>
    %111 = vector.shape_cast %110 : vector<1x2x128xf32> to vector<2x128xf32>
    %112 = vector.shape_cast %109 : vector<2x128xf32> to vector<1x2x128xf32>
    tpu.vector_store %arg4[%c0_6, %c0_7, %c0_8], %112 {strides = array<i32>} : memref<2x2x128xf32, #tpu.memory_space<vmem>>, vector<1x2x128xf32>,
    %113 = tpu.concatenate %90, %96 in 0 : vector<1x128xf32>, vector<1x128xf32> -> vector<2x128xf32>
    %c0_9 = arith.constant 0 : index
    %c0_10 = arith.constant 0 : index
    %c0_11 = arith.constant 0 : index
    %114 = vector.load %arg5[%c0_9, %c0_10, %c0_11] : memref<2x2x128xf32, #tpu.memory_space<vmem>>, vector<1x2x128xf32>
    %115 = vector.shape_cast %114 : vector<1x2x128xf32> to vector<2x128xf32>
    %116 = vector.shape_cast %113 : vector<2x128xf32> to vector<1x2x128xf32>
    tpu.vector_store %arg5[%c0_9, %c0_10, %c0_11], %116 {strides = array<i32>} : memref<2x2x128xf32, #tpu.memory_space<vmem>>, vector<1x2x128xf32>,
    %117 = vector.broadcast %13 : f32 to vector<1x128xf32>
    %118 = arith.cmpf ogt, %48, %117 : vector<1x128xf32>
    %119 = arith.extui %118 : vector<1x128xi1> to vector<1x128xi32>
    %120 = arith.sitofp %119 : vector<1x128xi32> to vector<1x128xf32>
    %121 = vector.broadcast %13 : f32 to vector<1x128xf32>
    %122 = arith.cmpf ogt, %54, %121 : vector<1x128xf32>
    %123 = arith.extui %122 : vector<1x128xi1> to vector<1x128xi32>
    %124 = arith.sitofp %123 : vector<1x128xi32> to vector<1x128xf32>
    %125 = vector.broadcast %12 : f32 to vector<1x128xf32>
    %126 = arith.mulf %125, %48 : vector<1x128xf32>
    %127 = arith.addf %126, %27 : vector<1x128xf32>
    %128 = vector.broadcast %13 : f32 to vector<1x128xf32>
    %129 = arith.mulf %120, %128 : vector<1x128xf32>
    %130 = arith.subf %127, %129 : vector<1x128xf32>
    %131 = vector.broadcast %12 : f32 to vector<1x128xf32>
    %132 = arith.mulf %131, %54 : vector<1x128xf32>
    %133 = arith.addf %132, %34 : vector<1x128xf32>
    %134 = vector.broadcast %13 : f32 to vector<1x128xf32>
    %135 = arith.mulf %124, %134 : vector<1x128xf32>
    %136 = arith.subf %133, %135 : vector<1x128xf32>
    %137 = vector.broadcast %13 : f32 to vector<1x128xf32>
    %138 = arith.cmpf ogt, %130, %137 : vector<1x128xf32>
    %139 = arith.extui %138 : vector<1x128xi1> to vector<1x128xi32>
    %140 = arith.sitofp %139 : vector<1x128xi32> to vector<1x128xf32>
    %141 = vector.broadcast %13 : f32 to vector<1x128xf32>
    %142 = arith.cmpf ogt, %136, %141 : vector<1x128xf32>
    %143 = arith.extui %142 : vector<1x128xi1> to vector<1x128xi32>
    %144 = arith.sitofp %143 : vector<1x128xi32> to vector<1x128xf32>
    %145 = vector.broadcast %6 : f32 to vector<1x128xf32>
    %146 = arith.mulf %145, %140 : vector<1x128xf32>
    %147 = vector.broadcast %7 : f32 to vector<1x128xf32>
    %148 = arith.mulf %147, %144 : vector<1x128xf32>
    %149 = arith.addf %146, %148 : vector<1x128xf32>
    %150 = vector.broadcast %10 : f32 to vector<1x128xf32>
    %151 = arith.addf %149, %150 : vector<1x128xf32>
    %152 = vector.broadcast %8 : f32 to vector<1x128xf32>
    %153 = arith.mulf %152, %140 : vector<1x128xf32>
    %154 = vector.broadcast %9 : f32 to vector<1x128xf32>
    %155 = arith.mulf %154, %144 : vector<1x128xf32>
    %156 = arith.addf %153, %155 : vector<1x128xf32>
    %157 = vector.broadcast %11 : f32 to vector<1x128xf32>
    %158 = arith.addf %156, %157 : vector<1x128xf32>
    %159 = vector.broadcast %15 : f32 to vector<1x128xf32>
    %160 = arith.cmpf ogt, %90, %159 : vector<1x128xf32>
    %161 = arith.extui %160 : vector<1x128xi1> to vector<1x128xi32>
    %162 = arith.sitofp %161 : vector<1x128xi32> to vector<1x128xf32>
    %163 = vector.broadcast %15 : f32 to vector<1x128xf32>
    %164 = arith.cmpf ogt, %96, %163 : vector<1x128xf32>
    %165 = arith.extui %164 : vector<1x128xi1> to vector<1x128xi32>
    %166 = arith.sitofp %165 : vector<1x128xi32> to vector<1x128xf32>
    %167 = vector.broadcast %14 : f32 to vector<1x128xf32>
    %168 = arith.mulf %167, %90 : vector<1x128xf32>
    %169 = arith.addf %168, %151 : vector<1x128xf32>
    %170 = vector.broadcast %15 : f32 to vector<1x128xf32>
    %171 = arith.mulf %162, %170 : vector<1x128xf32>
    %172 = arith.subf %169, %171 : vector<1x128xf32>
    %173 = vector.broadcast %14 : f32 to vector<1x128xf32>
    %174 = arith.mulf %173, %96 : vector<1x128xf32>
    %175 = arith.addf %174, %158 : vector<1x128xf32>
    %176 = vector.broadcast %15 : f32 to vector<1x128xf32>
    %177 = arith.mulf %166, %176 : vector<1x128xf32>
    %178 = arith.subf %175, %177 : vector<1x128xf32>
    %179 = vector.broadcast %15 : f32 to vector<1x128xf32>
    %180 = arith.cmpf ogt, %172, %179 : vector<1x128xf32>
    %181 = arith.extui %180 : vector<1x128xi1> to vector<1x128xi32>
    %182 = arith.sitofp %181 : vector<1x128xi32> to vector<1x128xf32>
    %183 = vector.broadcast %15 : f32 to vector<1x128xf32>
    %184 = arith.cmpf ogt, %178, %183 : vector<1x128xf32>
    %185 = arith.extui %184 : vector<1x128xi1> to vector<1x128xi32>
    %186 = arith.sitofp %185 : vector<1x128xi32> to vector<1x128xf32>
    %187 = tpu.concatenate %140, %144 in 0 : vector<1x128xf32>, vector<1x128xf32> -> vector<2x128xf32>
    %c1_12 = arith.constant 1 : index
    %c0_13 = arith.constant 0 : index
    %c0_14 = arith.constant 0 : index
    %188 = vector.load %arg3[%c1_12, %c0_13, %c0_14] : memref<2x2x128xf32, #tpu.memory_space<vmem>>, vector<1x2x128xf32>
    %189 = vector.shape_cast %188 : vector<1x2x128xf32> to vector<2x128xf32>
    %190 = vector.shape_cast %187 : vector<2x128xf32> to vector<1x2x128xf32>
    tpu.vector_store %arg3[%c1_12, %c0_13, %c0_14], %190 {strides = array<i32>} : memref<2x2x128xf32, #tpu.memory_space<vmem>>, vector<1x2x128xf32>,
    %191 = tpu.concatenate %182, %186 in 0 : vector<1x128xf32>, vector<1x128xf32> -> vector<2x128xf32>
    %c1_15 = arith.constant 1 : index
    %c0_16 = arith.constant 0 : index
    %c0_17 = arith.constant 0 : index
    %192 = vector.load %arg4[%c1_15, %c0_16, %c0_17] : memref<2x2x128xf32, #tpu.memory_space<vmem>>, vector<1x2x128xf32>
    %193 = vector.shape_cast %192 : vector<1x2x128xf32> to vector<2x128xf32>
    %194 = vector.shape_cast %191 : vector<2x128xf32> to vector<1x2x128xf32>
    tpu.vector_store %arg4[%c1_15, %c0_16, %c0_17], %194 {strides = array<i32>} : memref<2x2x128xf32, #tpu.memory_space<vmem>>, vector<1x2x128xf32>,
    %195 = tpu.concatenate %172, %178 in 0 : vector<1x128xf32>, vector<1x128xf32> -> vector<2x128xf32>
    %c1_18 = arith.constant 1 : index
    %c0_19 = arith.constant 0 : index
    %c0_20 = arith.constant 0 : index
    %196 = vector.load %arg5[%c1_18, %c0_19, %c0_20] : memref<2x2x128xf32, #tpu.memory_space<vmem>>, vector<1x2x128xf32>
    %197 = vector.shape_cast %196 : vector<1x2x128xf32> to vector<2x128xf32>
    %198 = vector.shape_cast %195 : vector<2x128xf32> to vector<1x2x128xf32>
    tpu.vector_store %arg5[%c1_18, %c0_19, %c0_20], %198 {strides = array<i32>} : memref<2x2x128xf32, #tpu.memory_space<vmem>>, vector<1x2x128xf32>,
    return
  }
  func.func @transform_0(%arg0: i32, %arg1: memref<16xf32, #tpu.memory_space<smem>>) -> (i32, i32, i32) {
    %c0_i32 = arith.constant 0 : i32
    %c0_i32_0 = arith.constant 0 : i32
    %c0_i32_1 = arith.constant 0 : i32
    return %c0_i32, %c0_i32_0, %arg0 : i32, i32, i32
  }
  func.func @transform_1(%arg0: i32, %arg1: memref<16xf32, #tpu.memory_space<smem>>) -> (i32, i32, i32) {
    %c0_i32 = arith.constant 0 : i32
    %c0_i32_0 = arith.constant 0 : i32
    %c0_i32_1 = arith.constant 0 : i32
    return %c0_i32, %c0_i32_0, %arg0 : i32, i32, i32
  }
  func.func @transform_2(%arg0: i32, %arg1: memref<16xf32, #tpu.memory_space<smem>>) -> (i32, i32, i32) {
    %c0_i32 = arith.constant 0 : i32
    %c0_i32_0 = arith.constant 0 : i32
    %c0_i32_1 = arith.constant 0 : i32
    return %c0_i32, %c0_i32_0, %arg0 : i32, i32, i32
  }
  func.func @transform_3(%arg0: i32, %arg1: memref<16xf32, #tpu.memory_space<smem>>) -> (i32, i32, i32) {
    %c0_i32 = arith.constant 0 : i32
    %c0_i32_0 = arith.constant 0 : i32
    %c0_i32_1 = arith.constant 0 : i32
    return %c0_i32, %c0_i32_0, %arg0 : i32, i32, i32
  }
}

</mosaic_0001>

<llo_original>
// kernel: tpu_custom_call.1
$region0: #{tpu_custom_call.1}
  #allocation0 [shape = 'u32[]', space=smem, size = 0x4, offset = 0x4, fixed_abs, tag = 'smem constant byte address 0x4 - core index']
  #allocation1 [shape = 'u32[72,128]{1,0:T(1,128)}', space=vmem, size = 0x9000, scoped, tag = 'internal scratch']
  #allocation2 [shape = 's32[1]{0}', space=sflag, size = 0x4, scoped, tag = 'scoped memory for tpu_custom_call.1']
  #allocation3 [shape = 'u8[512]{0}', space=smem, size = 0x200, scoped, tag = 'prefetched SMEM operand 0']
  %s0 = inlined_call_operand.hbm [shape: f32[16], index: 0, kind: input, shape index: {}]
  %s1 = inlined_call_operand.hbm [shape: f32[1,2,128], index: 1, kind: input, shape index: {}]
  %s2 = inlined_call_operand.hbm [shape: f32[2,2,128], index: 2, kind: output, shape index: {0}]
  %s3 = inlined_call_operand.hbm [shape: f32[2,2,128], index: 3, kind: output, shape index: {1}]
  %s4 = inlined_call_operand.hbm [shape: f32[2,2,128], index: 4, kind: output, shape index: {2}]
  %5 = xla_tuple %s2, %s3, %s4
  %s6 = sld [smem:[#allocation0]]
  $region34: #{tpu_custom_call.1} parent=0
    _
  %s8 = ssub.s32 1, %s6
  %s9 = scalar_select 0, %s8, %s6
  %s11 = sshll.u32 %s0, 4
  %s12 = int_to_ptr.hbm [resolvable:$true] %s11
  %14 = dma.hbm_to_smem %s12, 16, [#allocation3], [#allocation2]
  %16 = dma.done [#allocation2], 16
  %17 = sfence
  $region1: #{tpu_custom_call.1} parent=0
    #allocation4 [shape = 'u8[1024]{0}', space=vmem, size = 0x400, scoped, tag = 'input window, operand 1, single buffered']
    #allocation5 [shape = 's32[1]{0}', space=sflag, size = 0x4, scoped, tag = 'scoped memory for tpu_custom_call.1']
    #allocation6 [shape = 's32[1]{0}', space=sflag, size = 0x4, scoped, tag = 'scoped memory for tpu_custom_call.1']
    #allocation7 [shape = 'u8[2048]{0}', space=vmem, size = 0x800, scoped, tag = 'output window, operand 0, single buffered']
    #allocation8 [shape = 'u8[2048]{0}', space=vmem, size = 0x800, scoped, tag = 'output window, operand 1, single buffered']
    #allocation9 [shape = 's32[1]{0}', space=sflag, size = 0x4, scoped, tag = 'scoped memory for tpu_custom_call.1']
    #allocation10 [shape = 'u8[2048]{0}', space=vmem, size = 0x800, scoped, tag = 'output window, operand 2, single buffered']
    %18 = vsyncpa [#allocation5], 0
    %19 = vsyncpa [#allocation6], 0
    %20 = vsyncpa [#allocation9], 0
    // Predicated region
    $region2: #{tpu_custom_call.1} parent=1 // pred_check
      _
    $region3: #{tpu_custom_call.1} parent=1 // pred_check_branch
      %22 = sbr.rel (0) target = $region5
    $region4: #{tpu_custom_call.1} parent=1 // pred_region
      %24 = vsyncadd [#allocation5], 0
      %s26 = sshll.u32 %s1, 4
      %s27 = int_to_ptr.hbm [resolvable:$true] %s26
      %s28 = sshll.u32 [#allocation4], 4
      %s29 = int_to_ptr.vmem [resolvable:$true] %s28
      %31 = dma.hbm_to_vmem [thread:$0]  %s27, 32, %s29, [#allocation5]
    $region5: #{tpu_custom_call.1} parent=1 // pred_fallthru
      _
    // Predicated region
    $region6: #{tpu_custom_call.1} parent=1 // pred_check
      _
    $region7: #{tpu_custom_call.1} parent=1 // pred_check_branch
      %33 = sbr.rel (0) target = $region9
    $region8: #{tpu_custom_call.1} parent=1 // pred_region
      %35 = dma.done [#allocation5], 32
    $region9: #{tpu_custom_call.1} parent=1 // pred_fallthru
      _
    %s36 = sld [smem:[#allocation3]]
    %s37 = sld [smem:[#allocation3 + $0x1]]
    %s38 = sld [smem:[#allocation3 + $0x2]]
    %s39 = sld [smem:[#allocation3 + $0x3]]
    %s40 = sld [smem:[#allocation3 + $0x4]]
    %s41 = sld [smem:[#allocation3 + $0x5]]
    %s42 = sld [smem:[#allocation3 + $0x6]]
    %s43 = sld [smem:[#allocation3 + $0x7]]
    %s44 = sld [smem:[#allocation3 + $0x8]]
    %s45 = sld [smem:[#allocation3 + $0x9]]
    %s46 = sld [smem:[#allocation3 + $0xa]]
    %s47 = sld [smem:[#allocation3 + $0xb]]
    %s48 = sld [smem:[#allocation3 + $0xc]]
    %s49 = sld [smem:[#allocation3 + $0xd]]
    %s50 = sld [smem:[#allocation3 + $0xe]]
    %s51 = sld [smem:[#allocation3 + $0xf]]
    %v52 = vld [vmem:[#allocation4] sm:$0x3]
    %v53 = vstv %s36
    %v54 = vmul.f32 %v53, %v52
    %v55 = vstv %s37
    %v56 = vmul.f32 %v55, %v52
    %v58 = vrot.slane %v56, 1
    %v60 = vadd.f32 %v54, %v58
    %v61 = vstv %s40
    %v62 = vadd.f32 %v60, %v61
    %v63 = vstv %s38
    %v64 = vmul.f32 %v63, %v52
    %v65 = vstv %s39
    %v66 = vmul.f32 %v65, %v52
    %v68 = vrot.slane %v66, 1
    %v70 = vadd.f32 %v64, %v68
    %v71 = vstv %s41
    %v72 = vadd.f32 %v70, %v71
    %v73 = vstv %s49
    %vm74 = vcmp.gt.f32.partialorder 0.0, %v73
    %v75 = vsel %vm74, 1, 0
    %v76 = vcvt.s32.f32 %v75
    %v77 = vstv %s48
    %v78 = vmul.f32 %v77, 0.0
    %v79 = vadd.f32 %v78, %v62
    %v80 = vmul.f32 %v76, %v73
    %v81 = vsub.f32 %v79, %v80
    %v82 = vadd.f32 %v78, %v72
    %v83 = vsub.f32 %v82, %v80
    %vm84 = vcmp.gt.f32.partialorder %v81, %v73
    %v85 = vsel %vm84, 1, 0
    %v86 = vcvt.s32.f32 %v85
    %vm87 = vcmp.gt.f32.partialorder %v83, %v73
    %v88 = vsel %vm87, 1, 0
    %v89 = vcvt.s32.f32 %v88
    %v90 = vstv %s42
    %v91 = vmul.f32 %v90, %v86
    %v92 = vstv %s43
    %v93 = vmul.f32 %v92, %v89
    %v94 = vadd.f32 %v91, %v93
    %v95 = vstv %s46
    %v96 = vadd.f32 %v94, %v95
    %v97 = vstv %s44
    %v98 = vmul.f32 %v97, %v86
    %v99 = vstv %s45
    %v100 = vmul.f32 %v99, %v89
    %v101 = vadd.f32 %v98, %v100
    %v102 = vstv %s47
    %v103 = vadd.f32 %v101, %v102
    %v104 = vstv %s51
    %vm105 = vcmp.gt.f32.partialorder 0.0, %v104
    %v106 = vsel %vm105, 1, 0
    %v107 = vcvt.s32.f32 %v106
    %v108 = vstv %s50
    %v109 = vmul.f32 %v108, 0.0
    %v110 = vadd.f32 %v109, %v96
    %v111 = vmul.f32 %v107, %v104
    %v112 = vsub.f32 %v110, %v111
    %v113 = vadd.f32 %v109, %v103
    %v114 = vsub.f32 %v113, %v111
    %vm115 = vcmp.gt.f32.partialorder %v112, %v104
    %v116 = vsel %vm115, 1, 0
    %v117 = vcvt.s32.f32 %v116
    %vm118 = vcmp.gt.f32.partialorder %v114, %v104
    %v119 = vsel %vm118, 1, 0
    %v120 = vcvt.s32.f32 %v119
    %v122 = vrot.slane %v89, 7
    %vm124 = vcmask 1040384
    %v125 = vsel %vm124, %v86, %v122
    %126 = vst [vmem:[#allocation7] sm:$0x3] %v125
    %v128 = vrot.slane %v120, 7
    %v130 = vsel %vm124, %v117, %v128
    %131 = vst [vmem:[#allocation8] sm:$0x3] %v130
    %v133 = vrot.slane %v114, 7
    %v135 = vsel %vm124, %v112, %v133
    %136 = vst [vmem:[#allocation10] sm:$0x3] %v135
    %v137 = vmul.f32 %v77, %v81
    %v138 = vadd.f32 %v137, %v62
    %v139 = vmul.f32 %v86, %v73
    %v140 = vsub.f32 %v138, %v139
    %v141 = vmul.f32 %v77, %v83
    %v142 = vadd.f32 %v141, %v72
    %v143 = vmul.f32 %v89, %v73
    %v144 = vsub.f32 %v142, %v143
    %vm145 = vcmp.gt.f32.partialorder %v140, %v73
    %v146 = vsel %vm145, 1, 0
    %v147 = vcvt.s32.f32 %v146
    %vm148 = vcmp.gt.f32.partialorder %v144, %v73
    %v149 = vsel %vm148, 1, 0
    %v150 = vcvt.s32.f32 %v149
    %v151 = vmul.f32 %v90, %v147
    %v152 = vmul.f32 %v92, %v150
    %v153 = vadd.f32 %v151, %v152
    %v154 = vadd.f32 %v153, %v95
    %v155 = vmul.f32 %v97, %v147
    %v156 = vmul.f32 %v99, %v150
    %v157 = vadd.f32 %v155, %v156
    %v158 = vadd.f32 %v157, %v102
    %v159 = vmul.f32 %v108, %v112
    %v160 = vadd.f32 %v159, %v154
    %v161 = vmul.f32 %v117, %v104
    %v162 = vsub.f32 %v160, %v161
    %v163 = vmul.f32 %v108, %v114
    %v164 = vadd.f32 %v163, %v158
    %v165 = vmul.f32 %v120, %v104
    %v166 = vsub.f32 %v164, %v165
    %vm167 = vcmp.gt.f32.partialorder %v162, %v104
    %v168 = vsel %vm167, 1, 0
    %v169 = vcvt.s32.f32 %v168
    %vm170 = vcmp.gt.f32.partialorder %v166, %v104
    %v171 = vsel %vm170, 1, 0
    %v172 = vcvt.s32.f32 %v171
    %v174 = vrot.slane %v150, 7
    %v176 = vsel %vm124, %v147, %v174
    %s177 = scalar_lea.vmem [#allocation7], 2
    %178 = vst [vmem:[%s177] sm:$0x3] %v176
    %v180 = vrot.slane %v172, 7
    %v182 = vsel %vm124, %v169, %v180
    %s183 = scalar_lea.vmem [#allocation8], 2
    %184 = vst [vmem:[%s183] sm:$0x3] %v182
    %v186 = vrot.slane %v166, 7
    %v188 = vsel %vm124, %v162, %v186
    %s189 = scalar_lea.vmem [#allocation10], 2
    %190 = vst [vmem:[%s189] sm:$0x3] %v188
    // Predicated region
    $region10: #{tpu_custom_call.1} parent=1 // pred_check
      _
    $region11: #{tpu_custom_call.1} parent=1 // pred_check_branch
      %192 = sbr.rel (0) target = $region13
    $region12: #{tpu_custom_call.1} parent=1 // pred_region
      %194 = vsyncadd [#allocation6], 0
      %s195 = sshll.u32 [#allocation7], 4
      %s196 = int_to_ptr.vmem [resolvable:$true] %s195
      %s197 = sshll.u32 %s2, 4
      %s198 = int_to_ptr.hbm [resolvable:$true] %s197
      %203 = dma.vmem_to_hbm [thread:$0]  %s196, 64, %s198, [#allocation6], 32, 32, 2
    $region13: #{tpu_custom_call.1} parent=1 // pred_fallthru
      _
    // Predicated region
    $region14: #{tpu_custom_call.1} parent=1 // pred_check
      _
    $region15: #{tpu_custom_call.1} parent=1 // pred_check_branch
      %205 = sbr.rel (0) target = $region17
    $region16: #{tpu_custom_call.1} parent=1 // pred_region
      %207 = vsyncadd [#allocation9], 0
      %s208 = sshll.u32 [#allocation8], 4
      %s209 = int_to_ptr.vmem [resolvable:$true] %s208
      %s210 = sshll.u32 %s3, 4
      %s211 = int_to_ptr.hbm [resolvable:$true] %s210
      %216 = dma.vmem_to_hbm [thread:$0]  %s209, 64, %s211, [#allocation9], 32, 32, 2
    $region17: #{tpu_custom_call.1} parent=1 // pred_fallthru
      _
    // Predicated region
    $region18: #{tpu_custom_call.1} parent=1 // pred_check
      _
    $region19: #{tpu_custom_call.1} parent=1 // pred_check_branch
      %218 = sbr.rel (0) target = $region21
    $region20: #{tpu_custom_call.1} parent=1 // pred_region
      %220 = vsyncadd [#allocation9], 0
      %s221 = sshll.u32 [#allocation10], 4
      %s222 = int_to_ptr.vmem [resolvable:$true] %s221
      %s223 = sshll.u32 %s4, 4
      %s224 = int_to_ptr.hbm [resolvable:$true] %s223
      %229 = dma.vmem_to_hbm [thread:$0]  %s222, 64, %s224, [#allocation9], 32, 32, 2
    $region21: #{tpu_custom_call.1} parent=1 // pred_fallthru
      _
    // Predicated region
    $region22: #{tpu_custom_call.1} parent=1 // pred_check
      _
    $region23: #{tpu_custom_call.1} parent=1 // pred_check_branch
      %231 = sbr.rel (0) target = $region25
    $region24: #{tpu_custom_call.1} parent=1 // pred_region
      %233 = dma.done [#allocation6], 64
    $region25: #{tpu_custom_call.1} parent=1 // pred_fallthru
      _
    // Predicated region
    $region26: #{tpu_custom_call.1} parent=1 // pred_check
      _
    $region27: #{tpu_custom_call.1} parent=1 // pred_check_branch
      %235 = sbr.rel (0) target = $region29
    $region28: #{tpu_custom_call.1} parent=1 // pred_region
      %237 = dma.done [#allocation9], 64
    $region29: #{tpu_custom_call.1} parent=1 // pred_fallthru
      _
    // Predicated region
    $region30: #{tpu_custom_call.1} parent=1 // pred_check
      _
    $region31: #{tpu_custom_call.1} parent=1 // pred_check_branch
      %239 = sbr.rel (0) target = $region33
    $region32: #{tpu_custom_call.1} parent=1 // pred_region
      %241 = dma.done [#allocation9], 64
    $region33: #{tpu_custom_call.1} parent=1 // pred_fallthru
      _
    %242 = vsyncpa [#allocation5], 1
    %243 = vsyncpa [#allocation6], 1
    %244 = vsyncpa [#allocation9], 1

</llo_original>
